<compile_context>
chip_gen: v7x
topology: tpu7x:2x2x1
jax: 0.10.0
libtpu: 0.0.40
codegen_flags: <defaults>
</compile_context>

<pallas_src>
import functools

import jax
import jax.numpy as jnp
from jax import lax
from jax.experimental import pallas as pl
from jax.experimental.pallas import tpu as pltpu


def _round_up(x, m):
    return (x + m - 1) // m * m


def _tsm_kernel_full(fold, x_ref, o_ref):
    """Full-channel block.  Refs: (T, c, hw).  fold is a Python int, so the
    three channel regions are static slices -> plain copies, no selects."""
    T, c, hw = x_ref.shape
    nxt_hi = min(fold, c)            # channels [0, nxt_hi)       <- frame t+1
    prv_lo = nxt_hi
    prv_hi = min(2 * fold, c)        # channels [prv_lo, prv_hi)  <- frame t-1
    cur_lo = prv_hi                  # channels [cur_lo, c)       <- frame t

    for t in range(T):               # T is small (e.g. 10): static unroll
        if cur_lo < c:
            o_ref[t, cur_lo:, :] = x_ref[t, cur_lo:, :]
        if nxt_hi > 0:
            if t + 1 < T:
                o_ref[t, :nxt_hi, :] = x_ref[t + 1, :nxt_hi, :]
            else:
                o_ref[t, :nxt_hi, :] = jnp.zeros((nxt_hi, hw), x_ref.dtype)
        if prv_hi > prv_lo:
            if t > 0:
                o_ref[t, prv_lo:prv_hi, :] = x_ref[t - 1, prv_lo:prv_hi, :]
            else:
                o_ref[t, prv_lo:prv_hi, :] = jnp.zeros(
                    (prv_hi - prv_lo, hw), x_ref.dtype)


def _tsm_kernel_ctile(fold, c_tile, x_ref, o_ref):
    """Channel-tiled block.  Refs: (T, c_tile, hw).  The tile's global channel
    offset is runtime (program_id), so channel selection uses a lane-broadcast
    (c_tile, 1) mask; tiles entirely past 2*fold take a straight-copy path."""
    T, ct, hw = x_ref.shape
    c0 = pl.program_id(1) * c_tile   # global channel offset of this tile

    @pl.when(c0 >= 2 * fold)
    def _copy():
        o_ref[...] = x_ref[...]

    @pl.when(c0 < 2 * fold)
    def _shift():
        ch = c0 + lax.broadcasted_iota(jnp.int32, (ct, 1), dimension=0)
        is_next = ch < fold          # take t+1 (precedence over is_prev)
        is_prev = ch < 2 * fold      # (and not is_next) -> take t-1
        zero = jnp.zeros((1, 1), dtype=x_ref.dtype)
        for t in range(T):
            cur = x_ref[t]
            nxt = x_ref[t + 1] if t + 1 < T else zero
            prv = x_ref[t - 1] if t > 0 else zero
            o_ref[t] = jnp.where(is_next, nxt, jnp.where(is_prev, prv, cur))


def tsm_forward(x, n_segment=10, fold_div=3, max_block_bytes=None):
    """Pallas implementation of TSM.forward.  x: (nt, c, h, w)."""
    nt, c, h, w = x.shape
    assert nt % n_segment == 0, "nt must be divisible by n_segment"
    assert fold_div >= 1
    n_batch = nt // n_segment
    T = n_segment
    fold = c // fold_div
    hw = h * w
    itemsize = jnp.dtype(x.dtype).itemsize

    # ---- generation-aware VMEM budgets -------------------------------------
    try:
        vmem_cap = int(pltpu.get_tpu_info().vmem_capacity_bytes)
    except Exception:
        vmem_cap = 128 * 1024 * 1024
    if max_block_bytes is None:
        # ~4 MiB blocks on 64 MiB-VMEM chips (v7x), 8 MiB on 128 MiB chips.
        max_block_bytes = min(8 * 1024 * 1024, vmem_cap // 16)

    # sublane granularity for this dtype: 8 (f32) / 16 (bf16) / 32 (int8)
    sub = max(8, 8 * (4 // max(1, itemsize)))
    frame_row_bytes = T * hw * itemsize          # bytes of one channel, all T
    full_bytes = c * frame_row_bytes

    # ---- choose channel tile ------------------------------------------------
    # Prefer the full channel range (enables the static-slice kernel); tile
    # channels only if the block would blow the VMEM budget, or to give the
    # second TensorCore work when n_batch == 1.
    c_tile = c
    if c > sub:
        budget = max(sub, (max_block_bytes // max(1, frame_row_bytes)) // sub * sub)
        if full_bytes > max_block_bytes:
            c_tile = min(budget, _round_up(c, sub))
        elif n_batch < 2:
            half = sub * ((c // 2 + sub - 1) // sub)
            c_tile = min(budget, half)
        if c_tile >= c:
            c_tile = c
    # TODO(synk): if c <= sub but T*c*hw is still huge, spatial (lane) tiling
    # would be needed; not required for this module's shapes.

    xr = x.reshape(n_batch, T, c, hw)
    block_bytes = T * c_tile * hw * itemsize
    vmem_limit = int(min(vmem_cap * 3 // 4,
                         max(32 * 1024 * 1024, 6 * block_bytes)))
    cost = pl.CostEstimate(flops=0, transcendentals=0,
                           bytes_accessed=2 * x.size * itemsize)

    if c_tile == c:
        block = (pl.Squeezed(), T, c, hw)
        out = pl.pallas_call(
            functools.partial(_tsm_kernel_full, fold),
            out_shape=jax.ShapeDtypeStruct(xr.shape, x.dtype),
            grid=(n_batch,),
            in_specs=[pl.BlockSpec(block, lambda b: (b, 0, 0, 0))],
            out_specs=pl.BlockSpec(block, lambda b: (b, 0, 0, 0)),
            compiler_params=pltpu.CompilerParams(
                dimension_semantics=("parallel",),
                vmem_limit_bytes=vmem_limit),
            cost_estimate=cost,
        )(xr)
    else:
        n_ct = (c + c_tile - 1) // c_tile
        block = (pl.Squeezed(), T, c_tile, hw)
        out = pl.pallas_call(
            functools.partial(_tsm_kernel_ctile, fold, c_tile),
            out_shape=jax.ShapeDtypeStruct(xr.shape, x.dtype),
            grid=(n_batch, n_ct),
            in_specs=[pl.BlockSpec(block, lambda b, j: (b, 0, j, 0))],
            out_specs=pl.BlockSpec(block, lambda b, j: (b, 0, j, 0)),
            compiler_params=pltpu.CompilerParams(
                dimension_semantics=("parallel", "parallel"),
                vmem_limit_bytes=vmem_limit),
            cost_estimate=cost,
        )(xr)

    return out.reshape(nt, c, h, w)


def tsm_reference(x, n_segment=10, fold_div=3):
    """Pure-JAX reference mirroring the PyTorch semantics."""
    nt, c, h, w = x.shape
    n_batch = nt // n_segment
    fold = c // fold_div
    xv = x.reshape(n_batch, n_segment, c, h, w)
    out = jnp.zeros_like(xv)
    out = out.at[:, :-1, :fold].set(xv[:, 1:, :fold])
    out = out.at[:, 1:, fold:2 * fold].set(xv[:, :-1, fold:2 * fold])
    out = out.at[:, :, 2 * fold:].set(xv[:, :, 2 * fold:])
    return out.reshape(nt, c, h, w)


if __name__ == "__main__":
    key = jax.random.PRNGKey(0)

    # Case 1: small shapes, full-channel-block path (static-slice kernel).
    n_segment, fold_div = 10, 3
    n_batch, c, h, w = 2, 6, 16, 16
    nt = n_batch * n_segment
    x = jax.random.normal(key, (nt, c, h, w), dtype=jnp.float32)
    y = jax.block_until_ready(tsm_forward(x, n_segment, fold_div))
    y_ref = tsm_reference(x, n_segment, fold_div)
    assert y.shape == (nt, c, h, w)
    assert jnp.array_equal(y, y_ref), "full-block kernel mismatch vs reference"

    # Case 2: force the channel-tiled path (mask + copy fast path) with a
    # tiny per-block budget; exercises both pl.when branches.
    n_segment2, fold_div2 = 4, 3
    n_batch2, c2, h2, w2 = 2, 24, 8, 8
    nt2 = n_batch2 * n_segment2
    x2 = jax.random.normal(jax.random.PRNGKey(0), (nt2, c2, h2, w2),
                           dtype=jnp.float32)
    y2 = jax.block_until_ready(
        tsm_forward(x2, n_segment2, fold_div2, max_block_bytes=8 * 1024))
    y2_ref = tsm_reference(x2, n_segment2, fold_div2)
    assert jnp.array_equal(y2, y2_ref), "channel-tiled kernel mismatch vs reference"

    print("KERNEL_OK")
</pallas_src>

<mosaic_0001>
module attributes {stable_mosaic.version = 11 : i64} {
  func.func @_tsm_kernel_full(%arg0: i32, %arg1: memref<1x10x6x256xf32, #tpu.memory_space<vmem>>, %arg2: memref<1x10x6x256xf32, #tpu.memory_space<vmem>>) attributes {dimension_semantics = [#tpu.dimension_semantics<parallel>], iteration_bounds = array<i64: 2>, scalar_prefetch = 0 : i64, scratch_operands = 0 : i64, tpu.core_type = #tpu.core_type<tc>, window_params = [{transform_indices = @transform_0, window_bounds = array<i64: 1, 10, 6, 256>}, {transform_indices = @transform_1, window_bounds = array<i64: 1, 10, 6, 256>}]} {
    %c0 = arith.constant 0 : index
    %c0_0 = arith.constant 0 : index
    %c4 = arith.constant 4 : index
    %c0_1 = arith.constant 0 : index
    %0 = vector.load %arg1[%c0, %c0_0, %c4, %c0_1] : memref<1x10x6x256xf32, #tpu.memory_space<vmem>>, vector<1x1x2x256xf32>
    %1 = vector.shape_cast %0 : vector<1x1x2x256xf32> to vector<2x256xf32>
    %c0_2 = arith.constant 0 : index
    %c0_3 = arith.constant 0 : index
    %c4_4 = arith.constant 4 : index
    %c0_5 = arith.constant 0 : index
    %2 = vector.load %arg2[%c0_2, %c0_3, %c4_4, %c0_5] : memref<1x10x6x256xf32, #tpu.memory_space<vmem>>, vector<1x1x2x256xf32>
    %3 = vector.shape_cast %2 : vector<1x1x2x256xf32> to vector<2x256xf32>
    %4 = vector.shape_cast %1 : vector<2x256xf32> to vector<1x1x2x256xf32>
    tpu.vector_store %arg2[%c0_2, %c0_3, %c4_4, %c0_5], %4 {strides = array<i32>} : memref<1x10x6x256xf32, #tpu.memory_space<vmem>>, vector<1x1x2x256xf32>,
    %c0_6 = arith.constant 0 : index
    %c1 = arith.constant 1 : index
    %c0_7 = arith.constant 0 : index
    %c0_8 = arith.constant 0 : index
    %5 = vector.load %arg1[%c0_6, %c1, %c0_7, %c0_8] : memref<1x10x6x256xf32, #tpu.memory_space<vmem>>, vector<1x1x2x256xf32>
    %6 = vector.shape_cast %5 : vector<1x1x2x256xf32> to vector<2x256xf32>
    %c0_9 = arith.constant 0 : index
    %c0_10 = arith.constant 0 : index
    %c0_11 = arith.constant 0 : index
    %c0_12 = arith.constant 0 : index
    %7 = vector.load %arg2[%c0_9, %c0_10, %c0_11, %c0_12] : memref<1x10x6x256xf32, #tpu.memory_space<vmem>>, vector<1x1x2x256xf32>
    %8 = vector.shape_cast %7 : vector<1x1x2x256xf32> to vector<2x256xf32>
    %9 = vector.shape_cast %6 : vector<2x256xf32> to vector<1x1x2x256xf32>
    tpu.vector_store %arg2[%c0_9, %c0_10, %c0_11, %c0_12], %9 {strides = array<i32>} : memref<1x10x6x256xf32, #tpu.memory_space<vmem>>, vector<1x1x2x256xf32>,
    %cst = arith.constant 0.000000e+00 : f32
    %10 = vector.broadcast %cst : f32 to vector<2x256xf32>
    %c0_13 = arith.constant 0 : index
    %c0_14 = arith.constant 0 : index
    %c2 = arith.constant 2 : index
    %c0_15 = arith.constant 0 : index
    %11 = vector.load %arg2[%c0_13, %c0_14, %c2, %c0_15] : memref<1x10x6x256xf32, #tpu.memory_space<vmem>>, vector<1x1x2x256xf32>
    %12 = vector.shape_cast %11 : vector<1x1x2x256xf32> to vector<2x256xf32>
    %13 = vector.shape_cast %10 : vector<2x256xf32> to vector<1x1x2x256xf32>
    tpu.vector_store %arg2[%c0_13, %c0_14, %c2, %c0_15], %13 {strides = array<i32>} : memref<1x10x6x256xf32, #tpu.memory_space<vmem>>, vector<1x1x2x256xf32>,
    %c0_16 = arith.constant 0 : index
    %c1_17 = arith.constant 1 : index
    %c4_18 = arith.constant 4 : index
    %c0_19 = arith.constant 0 : index
    %14 = vector.load %arg1[%c0_16, %c1_17, %c4_18, %c0_19] : memref<1x10x6x256xf32, #tpu.memory_space<vmem>>, vector<1x1x2x256xf32>
    %15 = vector.shape_cast %14 : vector<1x1x2x256xf32> to vector<2x256xf32>
    %c0_20 = arith.constant 0 : index
    %c1_21 = arith.constant 1 : index
    %c4_22 = arith.constant 4 : index
    %c0_23 = arith.constant 0 : index
    %16 = vector.load %arg2[%c0_20, %c1_21, %c4_22, %c0_23] : memref<1x10x6x256xf32, #tpu.memory_space<vmem>>, vector<1x1x2x256xf32>
    %17 = vector.shape_cast %16 : vector<1x1x2x256xf32> to vector<2x256xf32>
    %18 = vector.shape_cast %15 : vector<2x256xf32> to vector<1x1x2x256xf32>
    tpu.vector_store %arg2[%c0_20, %c1_21, %c4_22, %c0_23], %18 {strides = array<i32>} : memref<1x10x6x256xf32, #tpu.memory_space<vmem>>, vector<1x1x2x256xf32>,
    %c0_24 = arith.constant 0 : index
    %c2_25 = arith.constant 2 : index
    %c0_26 = arith.constant 0 : index
    %c0_27 = arith.constant 0 : index
    %19 = vector.load %arg1[%c0_24, %c2_25, %c0_26, %c0_27] : memref<1x10x6x256xf32, #tpu.memory_space<vmem>>, vector<1x1x2x256xf32>
    %20 = vector.shape_cast %19 : vector<1x1x2x256xf32> to vector<2x256xf32>
    %c0_28 = arith.constant 0 : index
    %c1_29 = arith.constant 1 : index
    %c0_30 = arith.constant 0 : index
    %c0_31 = arith.constant 0 : index
    %21 = vector.load %arg2[%c0_28, %c1_29, %c0_30, %c0_31] : memref<1x10x6x256xf32, #tpu.memory_space<vmem>>, vector<1x1x2x256xf32>
    %22 = vector.shape_cast %21 : vector<1x1x2x256xf32> to vector<2x256xf32>
    %23 = vector.shape_cast %20 : vector<2x256xf32> to vector<1x1x2x256xf32>
    tpu.vector_store %arg2[%c0_28, %c1_29, %c0_30, %c0_31], %23 {strides = array<i32>} : memref<1x10x6x256xf32, #tpu.memory_space<vmem>>, vector<1x1x2x256xf32>,
    %c0_32 = arith.constant 0 : index
    %c0_33 = arith.constant 0 : index
    %c2_34 = arith.constant 2 : index
    %c0_35 = arith.constant 0 : index
    %24 = vector.load %arg1[%c0_32, %c0_33, %c2_34, %c0_35] : memref<1x10x6x256xf32, #tpu.memory_space<vmem>>, vector<1x1x2x256xf32>
    %25 = vector.shape_cast %24 : vector<1x1x2x256xf32> to vector<2x256xf32>
    %c0_36 = arith.constant 0 : index
    %c1_37 = arith.constant 1 : index
    %c2_38 = arith.constant 2 : index
    %c0_39 = arith.constant 0 : index
    %26 = vector.load %arg2[%c0_36, %c1_37, %c2_38, %c0_39] : memref<1x10x6x256xf32, #tpu.memory_space<vmem>>, vector<1x1x2x256xf32>
    %27 = vector.shape_cast %26 : vector<1x1x2x256xf32> to vector<2x256xf32>
    %28 = vector.shape_cast %25 : vector<2x256xf32> to vector<1x1x2x256xf32>
    tpu.vector_store %arg2[%c0_36, %c1_37, %c2_38, %c0_39], %28 {strides = array<i32>} : memref<1x10x6x256xf32, #tpu.memory_space<vmem>>, vector<1x1x2x256xf32>,
    %c0_40 = arith.constant 0 : index
    %c2_41 = arith.constant 2 : index
    %c4_42 = arith.constant 4 : index
    %c0_43 = arith.constant 0 : index
    %29 = vector.load %arg1[%c0_40, %c2_41, %c4_42, %c0_43] : memref<1x10x6x256xf32, #tpu.memory_space<vmem>>, vector<1x1x2x256xf32>
    %30 = vector.shape_cast %29 : vector<1x1x2x256xf32> to vector<2x256xf32>
    %c0_44 = arith.constant 0 : index
    %c2_45 = arith.constant 2 : index
    %c4_46 = arith.constant 4 : index
    %c0_47 = arith.constant 0 : index
    %31 = vector.load %arg2[%c0_44, %c2_45, %c4_46, %c0_47] : memref<1x10x6x256xf32, #tpu.memory_space<vmem>>, vector<1x1x2x256xf32>
    %32 = vector.shape_cast %31 : vector<1x1x2x256xf32> to vector<2x256xf32>
    %33 = vector.shape_cast %30 : vector<2x256xf32> to vector<1x1x2x256xf32>
    tpu.vector_store %arg2[%c0_44, %c2_45, %c4_46, %c0_47], %33 {strides = array<i32>} : memref<1x10x6x256xf32, #tpu.memory_space<vmem>>, vector<1x1x2x256xf32>,
    %c0_48 = arith.constant 0 : index
    %c3 = arith.constant 3 : index
    %c0_49 = arith.constant 0 : index
    %c0_50 = arith.constant 0 : index
    %34 = vector.load %arg1[%c0_48, %c3, %c0_49, %c0_50] : memref<1x10x6x256xf32, #tpu.memory_space<vmem>>, vector<1x1x2x256xf32>
    %35 = vector.shape_cast %34 : vector<1x1x2x256xf32> to vector<2x256xf32>
    %c0_51 = arith.constant 0 : index
    %c2_52 = arith.constant 2 : index
    %c0_53 = arith.constant 0 : index
    %c0_54 = arith.constant 0 : index
    %36 = vector.load %arg2[%c0_51, %c2_52, %c0_53, %c0_54] : memref<1x10x6x256xf32, #tpu.memory_space<vmem>>, vector<1x1x2x256xf32>
    %37 = vector.shape_cast %36 : vector<1x1x2x256xf32> to vector<2x256xf32>
    %38 = vector.shape_cast %35 : vector<2x256xf32> to vector<1x1x2x256xf32>
    tpu.vector_store %arg2[%c0_51, %c2_52, %c0_53, %c0_54], %38 {strides = array<i32>} : memref<1x10x6x256xf32, #tpu.memory_space<vmem>>, vector<1x1x2x256xf32>,
    %c0_55 = arith.constant 0 : index
    %c1_56 = arith.constant 1 : index
    %c2_57 = arith.constant 2 : index
    %c0_58 = arith.constant 0 : index
    %39 = vector.load %arg1[%c0_55, %c1_56, %c2_57, %c0_58] : memref<1x10x6x256xf32, #tpu.memory_space<vmem>>, vector<1x1x2x256xf32>
    %40 = vector.shape_cast %39 : vector<1x1x2x256xf32> to vector<2x256xf32>
    %c0_59 = arith.constant 0 : index
    %c2_60 = arith.constant 2 : index
    %c2_61 = arith.constant 2 : index
    %c0_62 = arith.constant 0 : index
    %41 = vector.load %arg2[%c0_59, %c2_60, %c2_61, %c0_62] : memref<1x10x6x256xf32, #tpu.memory_space<vmem>>, vector<1x1x2x256xf32>
    %42 = vector.shape_cast %41 : vector<1x1x2x256xf32> to vector<2x256xf32>
    %43 = vector.shape_cast %40 : vector<2x256xf32> to vector<1x1x2x256xf32>
    tpu.vector_store %arg2[%c0_59, %c2_60, %c2_61, %c0_62], %43 {strides = array<i32>} : memref<1x10x6x256xf32, #tpu.memory_space<vmem>>, vector<1x1x2x256xf32>,
    %c0_63 = arith.constant 0 : index
    %c3_64 = arith.constant 3 : index
    %c4_65 = arith.constant 4 : index
    %c0_66 = arith.constant 0 : index
    %44 = vector.load %arg1[%c0_63, %c3_64, %c4_65, %c0_66] : memref<1x10x6x256xf32, #tpu.memory_space<vmem>>, vector<1x1x2x256xf32>
    %45 = vector.shape_cast %44 : vector<1x1x2x256xf32> to vector<2x256xf32>
    %c0_67 = arith.constant 0 : index
    %c3_68 = arith.constant 3 : index
    %c4_69 = arith.constant 4 : index
    %c0_70 = arith.constant 0 : index
    %46 = vector.load %arg2[%c0_67, %c3_68, %c4_69, %c0_70] : memref<1x10x6x256xf32, #tpu.memory_space<vmem>>, vector<1x1x2x256xf32>
    %47 = vector.shape_cast %46 : vector<1x1x2x256xf32> to vector<2x256xf32>
    %48 = vector.shape_cast %45 : vector<2x256xf32> to vector<1x1x2x256xf32>
    tpu.vector_store %arg2[%c0_67, %c3_68, %c4_69, %c0_70], %48 {strides = array<i32>} : memref<1x10x6x256xf32, #tpu.memory_space<vmem>>, vector<1x1x2x256xf32>,
    %c0_71 = arith.constant 0 : index
    %c4_72 = arith.constant 4 : index
    %c0_73 = arith.constant 0 : index
    %c0_74 = arith.constant 0 : index
    %49 = vector.load %arg1[%c0_71, %c4_72, %c0_73, %c0_74] : memref<1x10x6x256xf32, #tpu.memory_space<vmem>>, vector<1x1x2x256xf32>
    %50 = vector.shape_cast %49 : vector<1x1x2x256xf32> to vector<2x256xf32>
    %c0_75 = arith.constant 0 : index
    %c3_76 = arith.constant 3 : index
    %c0_77 = arith.constant 0 : index
    %c0_78 = arith.constant 0 : index
    %51 = vector.load %arg2[%c0_75, %c3_76, %c0_77, %c0_78] : memref<1x10x6x256xf32, #tpu.memory_space<vmem>>, vector<1x1x2x256xf32>
    %52 = vector.shape_cast %51 : vector<1x1x2x256xf32> to vector<2x256xf32>
    %53 = vector.shape_cast %50 : vector<2x256xf32> to vector<1x1x2x256xf32>
    tpu.vector_store %arg2[%c0_75, %c3_76, %c0_77, %c0_78], %53 {strides = array<i32>} : memref<1x10x6x256xf32, #tpu.memory_space<vmem>>, vector<1x1x2x256xf32>,
    %c0_79 = arith.constant 0 : index
    %c2_80 = arith.constant 2 : index
    %c2_81 = arith.constant 2 : index
    %c0_82 = arith.constant 0 : index
    %54 = vector.load %arg1[%c0_79, %c2_80, %c2_81, %c0_82] : memref<1x10x6x256xf32, #tpu.memory_space<vmem>>, vector<1x1x2x256xf32>
    %55 = vector.shape_cast %54 : vector<1x1x2x256xf32> to vector<2x256xf32>
    %c0_83 = arith.constant 0 : index
    %c3_84 = arith.constant 3 : index
    %c2_85 = arith.constant 2 : index
    %c0_86 = arith.constant 0 : index
    %56 = vector.load %arg2[%c0_83, %c3_84, %c2_85, %c0_86] : memref<1x10x6x256xf32, #tpu.memory_space<vmem>>, vector<1x1x2x256xf32>
    %57 = vector.shape_cast %56 : vector<1x1x2x256xf32> to vector<2x256xf32>
    %58 = vector.shape_cast %55 : vector<2x256xf32> to vector<1x1x2x256xf32>
    tpu.vector_store %arg2[%c0_83, %c3_84, %c2_85, %c0_86], %58 {strides = array<i32>} : memref<1x10x6x256xf32, #tpu.memory_space<vmem>>, vector<1x1x2x256xf32>,
    %c0_87 = arith.constant 0 : index
    %c4_88 = arith.constant 4 : index
    %c4_89 = arith.constant 4 : index
    %c0_90 = arith.constant 0 : index
    %59 = vector.load %arg1[%c0_87, %c4_88, %c4_89, %c0_90] : memref<1x10x6x256xf32, #tpu.memory_space<vmem>>, vector<1x1x2x256xf32>
    %60 = vector.shape_cast %59 : vector<1x1x2x256xf32> to vector<2x256xf32>
    %c0_91 = arith.constant 0 : index
    %c4_92 = arith.constant 4 : index
    %c4_93 = arith.constant 4 : index
    %c0_94 = arith.constant 0 : index
    %61 = vector.load %arg2[%c0_91, %c4_92, %c4_93, %c0_94] : memref<1x10x6x256xf32, #tpu.memory_space<vmem>>, vector<1x1x2x256xf32>
    %62 = vector.shape_cast %61 : vector<1x1x2x256xf32> to vector<2x256xf32>
    %63 = vector.shape_cast %60 : vector<2x256xf32> to vector<1x1x2x256xf32>
    tpu.vector_store %arg2[%c0_91, %c4_92, %c4_93, %c0_94], %63 {strides = array<i32>} : memref<1x10x6x256xf32, #tpu.memory_space<vmem>>, vector<1x1x2x256xf32>,
    %c0_95 = arith.constant 0 : index
    %c5 = arith.constant 5 : index
    %c0_96 = arith.constant 0 : index
    %c0_97 = arith.constant 0 : index
    %64 = vector.load %arg1[%c0_95, %c5, %c0_96, %c0_97] : memref<1x10x6x256xf32, #tpu.memory_space<vmem>>, vector<1x1x2x256xf32>
    %65 = vector.shape_cast %64 : vector<1x1x2x256xf32> to vector<2x256xf32>
    %c0_98 = arith.constant 0 : index
    %c4_99 = arith.constant 4 : index
    %c0_100 = arith.constant 0 : index
    %c0_101 = arith.constant 0 : index
    %66 = vector.load %arg2[%c0_98, %c4_99, %c0_100, %c0_101] : memref<1x10x6x256xf32, #tpu.memory_space<vmem>>, vector<1x1x2x256xf32>
    %67 = vector.shape_cast %66 : vector<1x1x2x256xf32> to vector<2x256xf32>
    %68 = vector.shape_cast %65 : vector<2x256xf32> to vector<1x1x2x256xf32>
    tpu.vector_store %arg2[%c0_98, %c4_99, %c0_100, %c0_101], %68 {strides = array<i32>} : memref<1x10x6x256xf32, #tpu.memory_space<vmem>>, vector<1x1x2x256xf32>,
    %c0_102 = arith.constant 0 : index
    %c3_103 = arith.constant 3 : index
    %c2_104 = arith.constant 2 : index
    %c0_105 = arith.constant 0 : index
    %69 = vector.load %arg1[%c0_102, %c3_103, %c2_104, %c0_105] : memref<1x10x6x256xf32, #tpu.memory_space<vmem>>, vector<1x1x2x256xf32>
    %70 = vector.shape_cast %69 : vector<1x1x2x256xf32> to vector<2x256xf32>
    %c0_106 = arith.constant 0 : index
    %c4_107 = arith.constant 4 : index
    %c2_108 = arith.constant 2 : index
    %c0_109 = arith.constant 0 : index
    %71 = vector.load %arg2[%c0_106, %c4_107, %c2_108, %c0_109] : memref<1x10x6x256xf32, #tpu.memory_space<vmem>>, vector<1x1x2x256xf32>
    %72 = vector.shape_cast %71 : vector<1x1x2x256xf32> to vector<2x256xf32>
    %73 = vector.shape_cast %70 : vector<2x256xf32> to vector<1x1x2x256xf32>
    tpu.vector_store %arg2[%c0_106, %c4_107, %c2_108, %c0_109], %73 {strides = array<i32>} : memref<1x10x6x256xf32, #tpu.memory_space<vmem>>, vector<1x1x2x256xf32>,
    %c0_110 = arith.constant 0 : index
    %c5_111 = arith.constant 5 : index
    %c4_112 = arith.constant 4 : index
    %c0_113 = arith.constant 0 : index
    %74 = vector.load %arg1[%c0_110, %c5_111, %c4_112, %c0_113] : memref<1x10x6x256xf32, #tpu.memory_space<vmem>>, vector<1x1x2x256xf32>
    %75 = vector.shape_cast %74 : vector<1x1x2x256xf32> to vector<2x256xf32>
    %c0_114 = arith.constant 0 : index
    %c5_115 = arith.constant 5 : index
    %c4_116 = arith.constant 4 : index
    %c0_117 = arith.constant 0 : index
    %76 = vector.load %arg2[%c0_114, %c5_115, %c4_116, %c0_117] : memref<1x10x6x256xf32, #tpu.memory_space<vmem>>, vector<1x1x2x256xf32>
    %77 = vector.shape_cast %76 : vector<1x1x2x256xf32> to vector<2x256xf32>
    %78 = vector.shape_cast %75 : vector<2x256xf32> to vector<1x1x2x256xf32>
    tpu.vector_store %arg2[%c0_114, %c5_115, %c4_116, %c0_117], %78 {strides = array<i32>} : memref<1x10x6x256xf32, #tpu.memory_space<vmem>>, vector<1x1x2x256xf32>,
    %c0_118 = arith.constant 0 : index
    %c6 = arith.constant 6 : index
    %c0_119 = arith.constant 0 : index
    %c0_120 = arith.constant 0 : index
    %79 = vector.load %arg1[%c0_118, %c6, %c0_119, %c0_120] : memref<1x10x6x256xf32, #tpu.memory_space<vmem>>, vector<1x1x2x256xf32>
    %80 = vector.shape_cast %79 : vector<1x1x2x256xf32> to vector<2x256xf32>
    %c0_121 = arith.constant 0 : index
    %c5_122 = arith.constant 5 : index
    %c0_123 = arith.constant 0 : index
    %c0_124 = arith.constant 0 : index
    %81 = vector.load %arg2[%c0_121, %c5_122, %c0_123, %c0_124] : memref<1x10x6x256xf32, #tpu.memory_space<vmem>>, vector<1x1x2x256xf32>
    %82 = vector.shape_cast %81 : vector<1x1x2x256xf32> to vector<2x256xf32>
    %83 = vector.shape_cast %80 : vector<2x256xf32> to vector<1x1x2x256xf32>
    tpu.vector_store %arg2[%c0_121, %c5_122, %c0_123, %c0_124], %83 {strides = array<i32>} : memref<1x10x6x256xf32, #tpu.memory_space<vmem>>, vector<1x1x2x256xf32>,
    %c0_125 = arith.constant 0 : index
    %c4_126 = arith.constant 4 : index
    %c2_127 = arith.constant 2 : index
    %c0_128 = arith.constant 0 : index
    %84 = vector.load %arg1[%c0_125, %c4_126, %c2_127, %c0_128] : memref<1x10x6x256xf32, #tpu.memory_space<vmem>>, vector<1x1x2x256xf32>
    %85 = vector.shape_cast %84 : vector<1x1x2x256xf32> to vector<2x256xf32>
    %c0_129 = arith.constant 0 : index
    %c5_130 = arith.constant 5 : index
    %c2_131 = arith.constant 2 : index
    %c0_132 = arith.constant 0 : index
    %86 = vector.load %arg2[%c0_129, %c5_130, %c2_131, %c0_132] : memref<1x10x6x256xf32, #tpu.memory_space<vmem>>, vector<1x1x2x256xf32>
    %87 = vector.shape_cast %86 : vector<1x1x2x256xf32> to vector<2x256xf32>
    %88 = vector.shape_cast %85 : vector<2x256xf32> to vector<1x1x2x256xf32>
    tpu.vector_store %arg2[%c0_129, %c5_130, %c2_131, %c0_132], %88 {strides = array<i32>} : memref<1x10x6x256xf32, #tpu.memory_space<vmem>>, vector<1x1x2x256xf32>,
    %c0_133 = arith.constant 0 : index
    %c6_134 = arith.constant 6 : index
    %c4_135 = arith.constant 4 : index
    %c0_136 = arith.constant 0 : index
    %89 = vector.load %arg1[%c0_133, %c6_134, %c4_135, %c0_136] : memref<1x10x6x256xf32, #tpu.memory_space<vmem>>, vector<1x1x2x256xf32>
    %90 = vector.shape_cast %89 : vector<1x1x2x256xf32> to vector<2x256xf32>
    %c0_137 = arith.constant 0 : index
    %c6_138 = arith.constant 6 : index
    %c4_139 = arith.constant 4 : index
    %c0_140 = arith.constant 0 : index
    %91 = vector.load %arg2[%c0_137, %c6_138, %c4_139, %c0_140] : memref<1x10x6x256xf32, #tpu.memory_space<vmem>>, vector<1x1x2x256xf32>
    %92 = vector.shape_cast %91 : vector<1x1x2x256xf32> to vector<2x256xf32>
    %93 = vector.shape_cast %90 : vector<2x256xf32> to vector<1x1x2x256xf32>
    tpu.vector_store %arg2[%c0_137, %c6_138, %c4_139, %c0_140], %93 {strides = array<i32>} : memref<1x10x6x256xf32, #tpu.memory_space<vmem>>, vector<1x1x2x256xf32>,
    %c0_141 = arith.constant 0 : index
    %c7 = arith.constant 7 : index
    %c0_142 = arith.constant 0 : index
    %c0_143 = arith.constant 0 : index
    %94 = vector.load %arg1[%c0_141, %c7, %c0_142, %c0_143] : memref<1x10x6x256xf32, #tpu.memory_space<vmem>>, vector<1x1x2x256xf32>
    %95 = vector.shape_cast %94 : vector<1x1x2x256xf32> to vector<2x256xf32>
    %c0_144 = arith.constant 0 : index
    %c6_145 = arith.constant 6 : index
    %c0_146 = arith.constant 0 : index
    %c0_147 = arith.constant 0 : index
    %96 = vector.load %arg2[%c0_144, %c6_145, %c0_146, %c0_147] : memref<1x10x6x256xf32, #tpu.memory_space<vmem>>, vector<1x1x2x256xf32>
    %97 = vector.shape_cast %96 : vector<1x1x2x256xf32> to vector<2x256xf32>
    %98 = vector.shape_cast %95 : vector<2x256xf32> to vector<1x1x2x256xf32>
    tpu.vector_store %arg2[%c0_144, %c6_145, %c0_146, %c0_147], %98 {strides = array<i32>} : memref<1x10x6x256xf32, #tpu.memory_space<vmem>>, vector<1x1x2x256xf32>,
    %c0_148 = arith.constant 0 : index
    %c5_149 = arith.constant 5 : index
    %c2_150 = arith.constant 2 : index
    %c0_151 = arith.constant 0 : index
    %99 = vector.load %arg1[%c0_148, %c5_149, %c2_150, %c0_151] : memref<1x10x6x256xf32, #tpu.memory_space<vmem>>, vector<1x1x2x256xf32>
    %100 = vector.shape_cast %99 : vector<1x1x2x256xf32> to vector<2x256xf32>
    %c0_152 = arith.constant 0 : index
    %c6_153 = arith.constant 6 : index
    %c2_154 = arith.constant 2 : index
    %c0_155 = arith.constant 0 : index
    %101 = vector.load %arg2[%c0_152, %c6_153, %c2_154, %c0_155] : memref<1x10x6x256xf32, #tpu.memory_space<vmem>>, vector<1x1x2x256xf32>
    %102 = vector.shape_cast %101 : vector<1x1x2x256xf32> to vector<2x256xf32>
    %103 = vector.shape_cast %100 : vector<2x256xf32> to vector<1x1x2x256xf32>
    tpu.vector_store %arg2[%c0_152, %c6_153, %c2_154, %c0_155], %103 {strides = array<i32>} : memref<1x10x6x256xf32, #tpu.memory_space<vmem>>, vector<1x1x2x256xf32>,
    %c0_156 = arith.constant 0 : index
    %c7_157 = arith.constant 7 : index
    %c4_158 = arith.constant 4 : index
    %c0_159 = arith.constant 0 : index
    %104 = vector.load %arg1[%c0_156, %c7_157, %c4_158, %c0_159] : memref<1x10x6x256xf32, #tpu.memory_space<vmem>>, vector<1x1x2x256xf32>
    %105 = vector.shape_cast %104 : vector<1x1x2x256xf32> to vector<2x256xf32>
    %c0_160 = arith.constant 0 : index
    %c7_161 = arith.constant 7 : index
    %c4_162 = arith.constant 4 : index
    %c0_163 = arith.constant 0 : index
    %106 = vector.load %arg2[%c0_160, %c7_161, %c4_162, %c0_163] : memref<1x10x6x256xf32, #tpu.memory_space<vmem>>, vector<1x1x2x256xf32>
    %107 = vector.shape_cast %106 : vector<1x1x2x256xf32> to vector<2x256xf32>
    %108 = vector.shape_cast %105 : vector<2x256xf32> to vector<1x1x2x256xf32>
    tpu.vector_store %arg2[%c0_160, %c7_161, %c4_162, %c0_163], %108 {strides = array<i32>} : memref<1x10x6x256xf32, #tpu.memory_space<vmem>>, vector<1x1x2x256xf32>,
    %c0_164 = arith.constant 0 : index
    %c8 = arith.constant 8 : index
    %c0_165 = arith.constant 0 : index
    %c0_166 = arith.constant 0 : index
    %109 = vector.load %arg1[%c0_164, %c8, %c0_165, %c0_166] : memref<1x10x6x256xf32, #tpu.memory_space<vmem>>, vector<1x1x2x256xf32>
    %110 = vector.shape_cast %109 : vector<1x1x2x256xf32> to vector<2x256xf32>
    %c0_167 = arith.constant 0 : index
    %c7_168 = arith.constant 7 : index
    %c0_169 = arith.constant 0 : index
    %c0_170 = arith.constant 0 : index
    %111 = vector.load %arg2[%c0_167, %c7_168, %c0_169, %c0_170] : memref<1x10x6x256xf32, #tpu.memory_space<vmem>>, vector<1x1x2x256xf32>
    %112 = vector.shape_cast %111 : vector<1x1x2x256xf32> to vector<2x256xf32>
    %113 = vector.shape_cast %110 : vector<2x256xf32> to vector<1x1x2x256xf32>
    tpu.vector_store %arg2[%c0_167, %c7_168, %c0_169, %c0_170], %113 {strides = array<i32>} : memref<1x10x6x256xf32, #tpu.memory_space<vmem>>, vector<1x1x2x256xf32>,
    %c0_171 = arith.constant 0 : index
    %c6_172 = arith.constant 6 : index
    %c2_173 = arith.constant 2 : index
    %c0_174 = arith.constant 0 : index
    %114 = vector.load %arg1[%c0_171, %c6_172, %c2_173, %c0_174] : memref<1x10x6x256xf32, #tpu.memory_space<vmem>>, vector<1x1x2x256xf32>
    %115 = vector.shape_cast %114 : vector<1x1x2x256xf32> to vector<2x256xf32>
    %c0_175 = arith.constant 0 : index
    %c7_176 = arith.constant 7 : index
    %c2_177 = arith.constant 2 : index
    %c0_178 = arith.constant 0 : index
    %116 = vector.load %arg2[%c0_175, %c7_176, %c2_177, %c0_178] : memref<1x10x6x256xf32, #tpu.memory_space<vmem>>, vector<1x1x2x256xf32>
    %117 = vector.shape_cast %116 : vector<1x1x2x256xf32> to vector<2x256xf32>
    %118 = vector.shape_cast %115 : vector<2x256xf32> to vector<1x1x2x256xf32>
    tpu.vector_store %arg2[%c0_175, %c7_176, %c2_177, %c0_178], %118 {strides = array<i32>} : memref<1x10x6x256xf32, #tpu.memory_space<vmem>>, vector<1x1x2x256xf32>,
    %c0_179 = arith.constant 0 : index
    %c8_180 = arith.constant 8 : index
    %c4_181 = arith.constant 4 : index
    %c0_182 = arith.constant 0 : index
    %119 = vector.load %arg1[%c0_179, %c8_180, %c4_181, %c0_182] : memref<1x10x6x256xf32, #tpu.memory_space<vmem>>, vector<1x1x2x256xf32>
    %120 = vector.shape_cast %119 : vector<1x1x2x256xf32> to vector<2x256xf32>
    %c0_183 = arith.constant 0 : index
    %c8_184 = arith.constant 8 : index
    %c4_185 = arith.constant 4 : index
    %c0_186 = arith.constant 0 : index
    %121 = vector.load %arg2[%c0_183, %c8_184, %c4_185, %c0_186] : memref<1x10x6x256xf32, #tpu.memory_space<vmem>>, vector<1x1x2x256xf32>
    %122 = vector.shape_cast %121 : vector<1x1x2x256xf32> to vector<2x256xf32>
    %123 = vector.shape_cast %120 : vector<2x256xf32> to vector<1x1x2x256xf32>
    tpu.vector_store %arg2[%c0_183, %c8_184, %c4_185, %c0_186], %123 {strides = array<i32>} : memref<1x10x6x256xf32, #tpu.memory_space<vmem>>, vector<1x1x2x256xf32>,
    %c0_187 = arith.constant 0 : index
    %c9 = arith.constant 9 : index
    %c0_188 = arith.constant 0 : index
    %c0_189 = arith.constant 0 : index
    %124 = vector.load %arg1[%c0_187, %c9, %c0_188, %c0_189] : memref<1x10x6x256xf32, #tpu.memory_space<vmem>>, vector<1x1x2x256xf32>
    %125 = vector.shape_cast %124 : vector<1x1x2x256xf32> to vector<2x256xf32>
    %c0_190 = arith.constant 0 : index
    %c8_191 = arith.constant 8 : index
    %c0_192 = arith.constant 0 : index
    %c0_193 = arith.constant 0 : index
    %126 = vector.load %arg2[%c0_190, %c8_191, %c0_192, %c0_193] : memref<1x10x6x256xf32, #tpu.memory_space<vmem>>, vector<1x1x2x256xf32>
    %127 = vector.shape_cast %126 : vector<1x1x2x256xf32> to vector<2x256xf32>
    %128 = vector.shape_cast %125 : vector<2x256xf32> to vector<1x1x2x256xf32>
    tpu.vector_store %arg2[%c0_190, %c8_191, %c0_192, %c0_193], %128 {strides = array<i32>} : memref<1x10x6x256xf32, #tpu.memory_space<vmem>>, vector<1x1x2x256xf32>,
    %c0_194 = arith.constant 0 : index
    %c7_195 = arith.constant 7 : index
    %c2_196 = arith.constant 2 : index
    %c0_197 = arith.constant 0 : index
    %129 = vector.load %arg1[%c0_194, %c7_195, %c2_196, %c0_197] : memref<1x10x6x256xf32, #tpu.memory_space<vmem>>, vector<1x1x2x256xf32>
    %130 = vector.shape_cast %129 : vector<1x1x2x256xf32> to vector<2x256xf32>
    %c0_198 = arith.constant 0 : index
    %c8_199 = arith.constant 8 : index
    %c2_200 = arith.constant 2 : index
    %c0_201 = arith.constant 0 : index
    %131 = vector.load %arg2[%c0_198, %c8_199, %c2_200, %c0_201] : memref<1x10x6x256xf32, #tpu.memory_space<vmem>>, vector<1x1x2x256xf32>
    %132 = vector.shape_cast %131 : vector<1x1x2x256xf32> to vector<2x256xf32>
    %133 = vector.shape_cast %130 : vector<2x256xf32> to vector<1x1x2x256xf32>
    tpu.vector_store %arg2[%c0_198, %c8_199, %c2_200, %c0_201], %133 {strides = array<i32>} : memref<1x10x6x256xf32, #tpu.memory_space<vmem>>, vector<1x1x2x256xf32>,
    %c0_202 = arith.constant 0 : index
    %c9_203 = arith.constant 9 : index
    %c4_204 = arith.constant 4 : index
    %c0_205 = arith.constant 0 : index
    %134 = vector.load %arg1[%c0_202, %c9_203, %c4_204, %c0_205] : memref<1x10x6x256xf32, #tpu.memory_space<vmem>>, vector<1x1x2x256xf32>
    %135 = vector.shape_cast %134 : vector<1x1x2x256xf32> to vector<2x256xf32>
    %c0_206 = arith.constant 0 : index
    %c9_207 = arith.constant 9 : index
    %c4_208 = arith.constant 4 : index
    %c0_209 = arith.constant 0 : index
    %136 = vector.load %arg2[%c0_206, %c9_207, %c4_208, %c0_209] : memref<1x10x6x256xf32, #tpu.memory_space<vmem>>, vector<1x1x2x256xf32>
    %137 = vector.shape_cast %136 : vector<1x1x2x256xf32> to vector<2x256xf32>
    %138 = vector.shape_cast %135 : vector<2x256xf32> to vector<1x1x2x256xf32>
    tpu.vector_store %arg2[%c0_206, %c9_207, %c4_208, %c0_209], %138 {strides = array<i32>} : memref<1x10x6x256xf32, #tpu.memory_space<vmem>>, vector<1x1x2x256xf32>,
    %cst_210 = arith.constant 0.000000e+00 : f32
    %139 = vector.broadcast %cst_210 : f32 to vector<2x256xf32>
    %c0_211 = arith.constant 0 : index
    %c9_212 = arith.constant 9 : index
    %c0_213 = arith.constant 0 : index
    %c0_214 = arith.constant 0 : index
    %140 = vector.load %arg2[%c0_211, %c9_212, %c0_213, %c0_214] : memref<1x10x6x256xf32, #tpu.memory_space<vmem>>, vector<1x1x2x256xf32>
    %141 = vector.shape_cast %140 : vector<1x1x2x256xf32> to vector<2x256xf32>
    %142 = vector.shape_cast %139 : vector<2x256xf32> to vector<1x1x2x256xf32>
    tpu.vector_store %arg2[%c0_211, %c9_212, %c0_213, %c0_214], %142 {strides = array<i32>} : memref<1x10x6x256xf32, #tpu.memory_space<vmem>>, vector<1x1x2x256xf32>,
    %c0_215 = arith.constant 0 : index
    %c8_216 = arith.constant 8 : index
    %c2_217 = arith.constant 2 : index
    %c0_218 = arith.constant 0 : index
    %143 = vector.load %arg1[%c0_215, %c8_216, %c2_217, %c0_218] : memref<1x10x6x256xf32, #tpu.memory_space<vmem>>, vector<1x1x2x256xf32>
    %144 = vector.shape_cast %143 : vector<1x1x2x256xf32> to vector<2x256xf32>
    %c0_219 = arith.constant 0 : index
    %c9_220 = arith.constant 9 : index
    %c2_221 = arith.constant 2 : index
    %c0_222 = arith.constant 0 : index
    %145 = vector.load %arg2[%c0_219, %c9_220, %c2_221, %c0_222] : memref<1x10x6x256xf32, #tpu.memory_space<vmem>>, vector<1x1x2x256xf32>
    %146 = vector.shape_cast %145 : vector<1x1x2x256xf32> to vector<2x256xf32>
    %147 = vector.shape_cast %144 : vector<2x256xf32> to vector<1x1x2x256xf32>
    tpu.vector_store %arg2[%c0_219, %c9_220, %c2_221, %c0_222], %147 {strides = array<i32>} : memref<1x10x6x256xf32, #tpu.memory_space<vmem>>, vector<1x1x2x256xf32>,
    return
  }
  func.func @transform_0(%arg0: i32) -> (i32, i32, i32, i32) {
    %c0_i32 = arith.constant 0 : i32
    %c0_i32_0 = arith.constant 0 : i32
    %c0_i32_1 = arith.constant 0 : i32
    %c0_i32_2 = arith.constant 0 : i32
    return %arg0, %c0_i32, %c0_i32_0, %c0_i32_1 : i32, i32, i32, i32
  }
  func.func @transform_1(%arg0: i32) -> (i32, i32, i32, i32) {
    %c0_i32 = arith.constant 0 : i32
    %c0_i32_0 = arith.constant 0 : i32
    %c0_i32_1 = arith.constant 0 : i32
    %c0_i32_2 = arith.constant 0 : i32
    return %arg0, %c0_i32, %c0_i32_0, %c0_i32_1 : i32, i32, i32, i32
  }
}

</mosaic_0001>

<llo_original>
// kernel: tpu_custom_call.1
$region0: #{tpu_custom_call.1}
  #allocation0 [shape = 'u32[]', space=smem, size = 0x4, offset = 0x4, fixed_abs, tag = 'smem constant byte address 0x4 - core index']
  #allocation1 [shape = 'u32[144,128]{1,0:T(1,128)}', space=vmem, size = 0x12000, scoped, tag = 'internal scratch']
  %s0 = inlined_call_operand.vmem [shape: f32[2,10,6,256], index: 0, kind: input, shape index: {}]
  %s1 = inlined_call_operand.vmem [shape: f32[2,10,6,256], index: 1, kind: output, shape index: {}]
  %s2 = sld [smem:[#allocation0]]
  $region37: #{tpu_custom_call.1} parent=0
    _
  %s4 = ssub.s32 1, %s2
  %s5 = scalar_select 0, %s4, %s2
  loop: start=0, step=1, limit=4
  $region2: #{tpu_custom_call.1} parent=0 // loop_pre_header
    _
  $region3: #{tpu_custom_call.1} parent=0 // loop_header
    %s7 = sphi 0, %s11
    %p8 = scmp.ge.s32.totalorder %s7, 4
    %s17 = sphi 0, %s19
    %s20 = sphi 0, %s17
    %s21 = sphi 0, %s20
    %s37 = sphi 0, %s21
    %s43 = sphi 0, %s45
    %s46 = sphi 0, %s43
    %s47 = sphi 0, %s46
    %s63 = sphi 0, %s47
  $region4: #{tpu_custom_call.1} parent=0 // loop_header_branch
    %10 = sbr.rel (%p8) target = $region8
  $region5: #{tpu_custom_call.1} parent=0 // loop_body
    %s12 = ssub.s32 %s7, 1
    %s13 = ssub.s32 %s7, 2
    %s14 = sadd.s32 %s7, 1
    %s15 = ssub.s32 %s7, %s14
    %p16 = scmp.eq.s32.totalorder %s15, 0
    %s18 = sadd.s32 %s17, 1
    %s19 = scalar_select %p16, %s17, %s18
    %p22 = pneg %p16
    %p23 = scmp.eq.s32.totalorder %s7, 1
    %p24 = por %p22, %p23
    %p25 = scmp.ne.s32.totalorder %s17, %s20
    %p26 = scmp.eq.s32.totalorder %s7, 0
    %p27 = por %p25, %p26
    %p28 = scmp.ne.s32.totalorder %s17, %s20
    %p29 = scmp.eq.s32.totalorder %s12, 1
    %p30 = por %p28, %p29
    %p31 = scmp.ne.s32.totalorder %s20, %s21
    %p32 = scmp.eq.s32.totalorder %s12, 0
    %p33 = por %p31, %p32
    %p34 = scmp.ne.s32.totalorder %s20, %s21
    %p35 = scmp.eq.s32.totalorder %s13, 1
    %p36 = por %p34, %p35
    %p38 = scmp.ne.s32.totalorder %s21, %s37
    %p39 = scmp.eq.s32.totalorder %s13, 0
    %p40 = por %p38, %p39
    %s41 = ssub.s32 %s7, %s14
    %p42 = scmp.eq.s32.totalorder %s41, 0
    %s44 = sadd.s32 %s43, 1
    %s45 = scalar_select %p42, %s43, %s44
    %p48 = pneg %p42
    %p49 = scmp.eq.s32.totalorder %s7, 1
    %p50 = por %p48, %p49
    %p51 = scmp.ne.s32.totalorder %s43, %s46
    %p52 = scmp.eq.s32.totalorder %s7, 0
    %p53 = por %p51, %p52
    %p54 = scmp.ne.s32.totalorder %s43, %s46
    %p55 = scmp.eq.s32.totalorder %s12, 1
    %p56 = por %p54, %p55
    %p57 = scmp.ne.s32.totalorder %s46, %s47
    %p58 = scmp.eq.s32.totalorder %s12, 0
    %p59 = por %p57, %p58
    %p60 = scmp.ne.s32.totalorder %s46, %s47
    %p61 = scmp.eq.s32.totalorder %s13, 1
    %p62 = por %p60, %p61
    %p64 = scmp.ne.s32.totalorder %s47, %s63
    %p65 = scmp.eq.s32.totalorder %s13, 0
    %p66 = por %p64, %p65
    %p67 = scmp.le.s32.totalorder 1, %s7
    %p68 = scmp.lt.s32.totalorder %s7, 3
    %p69 = pnand %p67, %p68
    %p70 = pneg %p69
    // Predicated region
    $region9: #{tpu_custom_call.1} parent=5 // pred_check
      _
    $region10: #{tpu_custom_call.1} parent=5 // pred_check_branch
      %72 = sbr.rel (%p69) target = $region12
    $region11: #{tpu_custom_call.1} parent=5 // pred_region
      %s73 = ssub.s32 %s7, 1
    $region12: #{tpu_custom_call.1} parent=5 // pred_fallthru
      _
    %p74 = scmp.lt.s32.totalorder %s7, 2
    // Predicated region
    $region13: #{tpu_custom_call.1} parent=5 // pred_check
      %p75 = pneg %p74
    $region14: #{tpu_custom_call.1} parent=5 // pred_check_branch
      %77 = sbr.rel (%p75) target = $region16
    $region15: #{tpu_custom_call.1} parent=5 // pred_region
      // Predicated region
      $region17: #{tpu_custom_call.1} parent=15 // pred_check
        %p78 = pneg %p27
      $region18: #{tpu_custom_call.1} parent=15 // pred_check_branch
        %80 = sbr.rel (%p78) target = $region20
      $region19: #{tpu_custom_call.1} parent=15 // pred_region
        %p81 = scmp.lt.s32.totalorder %s7, 1
        %s82 = scalar_select %p81, %s7, 1
        %s83 = smul.addr %s82, 20
        %s84 = smul.addr %s83, 8
        %s85 = scalar_lea.vmem %s0, %s84
      $region20: #{tpu_custom_call.1} parent=15 // pred_fallthru
        _
    $region16: #{tpu_custom_call.1} parent=5 // pred_fallthru
      _
    %p86 = scmp.le.s32.totalorder 1, %s7
    %p87 = scmp.lt.s32.totalorder %s7, 3
    %p88 = pnand %p86, %p87
    %p89 = pneg %p88
    // Predicated region
    $region21: #{tpu_custom_call.1} parent=5 // pred_check
      _
    $region22: #{tpu_custom_call.1} parent=5 // pred_check_branch
      %91 = sbr.rel (%p88) target = $region24
    $region23: #{tpu_custom_call.1} parent=5 // pred_region
      %s92 = ssub.s32 %s7, 1
      %p93 = scmp.lt.s32.totalorder %s12, 1
      %s94 = scalar_select %p93, %s12, 1
      %s95 = smul.addr %s94, 20
      %s96 = smul.addr %s95, 8
      %s97 = scalar_lea.vmem %s0, %s96
      %p98 = pneg %p33
      %p99 = pneg %p30
      %p100 = pneg %p59
      %p101 = pneg %p56
      %p102 = scmp.lt.s32.totalorder %s12, 1
      %s103 = scalar_select %p102, %s12, 1
      %s104 = smul.addr %s103, 20
      %s105 = smul.addr %s104, 8
      %s106 = scalar_lea.vmem %s1, %s105
      %p107 = scmp.lt.s32.totalorder %s12, 1
      %s108 = scalar_select %p107, %s12, 1
      %s109 = smul.addr %s108, 20
      %s110 = smul.addr %s109, 8
      %s111 = scalar_lea.vmem %s0, %s110
      %p112 = scmp.lt.s32.totalorder %s12, 1
      %s113 = scalar_select %p112, %s12, 1
      %s114 = smul.addr %s113, 20
      %s115 = smul.addr %s114, 8
      %s116 = scalar_lea.vmem %s1, %s115
      %v117 = vld [vmem:[%s111] sm:$0x30]
      %v118 = vld [vmem:[%s111 + $0x8] sm:$0x30]
      %119 = vst [vmem:[%s116] sm:$0x30] %v117
      %120 = vst [vmem:[%s116 + $0x8] sm:$0x30] %v118
      %s121 = scalar_lea.vmem %s111, 16
      %v122 = vld [vmem:[%s121] sm:$0x3]
      %v123 = vld [vmem:[%s121 + $0x8] sm:$0x3]
      %124 = vst [vmem:[%s116] sm:$0x3] %v122
      %125 = vst [vmem:[%s116 + $0x8] sm:$0x3] %v123
      %126 = vst [vmem:[%s116] sm:$0xc] 0.0
      %127 = vst [vmem:[%s116 + $0x8] sm:$0xc] 0.0
      %v128 = vld [vmem:[%s121] sm:$0x30]
      %v129 = vld [vmem:[%s121 + $0x8] sm:$0x30]
      %s130 = scalar_lea.vmem %s116, 16
      %131 = vst [vmem:[%s130] sm:$0x30] %v128
      %132 = vst [vmem:[%s130 + $0x8] sm:$0x30] %v129
      %s133 = scalar_lea.vmem %s111, 32
      %v134 = vld [vmem:[%s133] sm:$0x3]
      %v135 = vld [vmem:[%s133 + $0x8] sm:$0x3]
      %136 = vst [vmem:[%s130] sm:$0x3] %v134
      %137 = vst [vmem:[%s130 + $0x8] sm:$0x3] %v135
      %v138 = vld [vmem:[%s111] sm:$0xc]
      %v139 = vld [vmem:[%s111 + $0x8] sm:$0xc]
      %140 = vst [vmem:[%s130] sm:$0xc] %v138
      %141 = vst [vmem:[%s130 + $0x8] sm:$0xc] %v139
      %v142 = vld [vmem:[%s133] sm:$0x30]
      %v143 = vld [vmem:[%s133 + $0x8] sm:$0x30]
      %s144 = scalar_lea.vmem %s116, 32
      %145 = vst [vmem:[%s144] sm:$0x30] %v142
      %146 = vst [vmem:[%s144 + $0x8] sm:$0x30] %v143
      %s147 = scalar_lea.vmem %s111, 48
      %v148 = vld [vmem:[%s147] sm:$0x3]
      %v149 = vld [vmem:[%s147 + $0x8] sm:$0x3]
      %150 = vst [vmem:[%s144] sm:$0x3] %v148
      %151 = vst [vmem:[%s144 + $0x8] sm:$0x3] %v149
      %v152 = vld [vmem:[%s121] sm:$0xc]
      %v153 = vld [vmem:[%s121 + $0x8] sm:$0xc]
      %154 = vst [vmem:[%s144] sm:$0xc] %v152
      %155 = vst [vmem:[%s144 + $0x8] sm:$0xc] %v153
      %v156 = vld [vmem:[%s147] sm:$0x30]
      %v157 = vld [vmem:[%s147 + $0x8] sm:$0x30]
      %s158 = scalar_lea.vmem %s116, 48
      %159 = vst [vmem:[%s158] sm:$0x30] %v156
      %160 = vst [vmem:[%s158 + $0x8] sm:$0x30] %v157
      %s161 = scalar_lea.vmem %s111, 64
      %v162 = vld [vmem:[%s161] sm:$0x3]
      %v163 = vld [vmem:[%s161 + $0x8] sm:$0x3]
      %164 = vst [vmem:[%s158] sm:$0x3] %v162
      %165 = vst [vmem:[%s158 + $0x8] sm:$0x3] %v163
      %v166 = vld [vmem:[%s133] sm:$0xc]
      %v167 = vld [vmem:[%s133 + $0x8] sm:$0xc]
      %168 = vst [vmem:[%s158] sm:$0xc] %v166
      %169 = vst [vmem:[%s158 + $0x8] sm:$0xc] %v167
      %v170 = vld [vmem:[%s161] sm:$0x30]
      %v171 = vld [vmem:[%s161 + $0x8] sm:$0x30]
      %s172 = scalar_lea.vmem %s116, 64
      %173 = vst [vmem:[%s172] sm:$0x30] %v170
      %174 = vst [vmem:[%s172 + $0x8] sm:$0x30] %v171
      %s175 = scalar_lea.vmem %s111, 80
      %v176 = vld [vmem:[%s175] sm:$0x3]
      %v177 = vld [vmem:[%s175 + $0x8] sm:$0x3]
      %178 = vst [vmem:[%s172] sm:$0x3] %v176
      %179 = vst [vmem:[%s172 + $0x8] sm:$0x3] %v177
      %v180 = vld [vmem:[%s147] sm:$0xc]
      %v181 = vld [vmem:[%s147 + $0x8] sm:$0xc]
      %182 = vst [vmem:[%s172] sm:$0xc] %v180
      %183 = vst [vmem:[%s172 + $0x8] sm:$0xc] %v181
      %v184 = vld [vmem:[%s175] sm:$0x30]
      %v185 = vld [vmem:[%s175 + $0x8] sm:$0x30]
      %s186 = scalar_lea.vmem %s116, 80
      %187 = vst [vmem:[%s186] sm:$0x30] %v184
      %188 = vst [vmem:[%s186 + $0x8] sm:$0x30] %v185
      %s189 = scalar_lea.vmem %s111, 96
      %v190 = vld [vmem:[%s189] sm:$0x3]
      %v191 = vld [vmem:[%s189 + $0x8] sm:$0x3]
      %192 = vst [vmem:[%s186] sm:$0x3] %v190
      %193 = vst [vmem:[%s186 + $0x8] sm:$0x3] %v191
      %v194 = vld [vmem:[%s161] sm:$0xc]
      %v195 = vld [vmem:[%s161 + $0x8] sm:$0xc]
      %196 = vst [vmem:[%s186] sm:$0xc] %v194
      %197 = vst [vmem:[%s186 + $0x8] sm:$0xc] %v195
      %v198 = vld [vmem:[%s189] sm:$0x30]
      %v199 = vld [vmem:[%s189 + $0x8] sm:$0x30]
      %s200 = scalar_lea.vmem %s116, 96
      %201 = vst [vmem:[%s200] sm:$0x30] %v198
      %202 = vst [vmem:[%s200 + $0x8] sm:$0x30] %v199
      %s203 = scalar_lea.vmem %s111, 112
      %v204 = vld [vmem:[%s203] sm:$0x3]
      %v205 = vld [vmem:[%s203 + $0x8] sm:$0x3]
      %206 = vst [vmem:[%s200] sm:$0x3] %v204
      %207 = vst [vmem:[%s200 + $0x8] sm:$0x3] %v205
      %v208 = vld [vmem:[%s175] sm:$0xc]
      %v209 = vld [vmem:[%s175 + $0x8] sm:$0xc]
      %210 = vst [vmem:[%s200] sm:$0xc] %v208
      %211 = vst [vmem:[%s200 + $0x8] sm:$0xc] %v209
      %v212 = vld [vmem:[%s203] sm:$0x30]
      %v213 = vld [vmem:[%s203 + $0x8] sm:$0x30]
      %s214 = scalar_lea.vmem %s116, 112
      %215 = vst [vmem:[%s214] sm:$0x30] %v212
      %216 = vst [vmem:[%s214 + $0x8] sm:$0x30] %v213
      %s217 = scalar_lea.vmem %s111, 128
      %v218 = vld [vmem:[%s217] sm:$0x3]
      %v219 = vld [vmem:[%s217 + $0x8] sm:$0x3]
      %220 = vst [vmem:[%s214] sm:$0x3] %v218
      %221 = vst [vmem:[%s214 + $0x8] sm:$0x3] %v219
      %v222 = vld [vmem:[%s189] sm:$0xc]
      %v223 = vld [vmem:[%s189 + $0x8] sm:$0xc]
      %224 = vst [vmem:[%s214] sm:$0xc] %v222
      %225 = vst [vmem:[%s214 + $0x8] sm:$0xc] %v223
      %v226 = vld [vmem:[%s217] sm:$0x30]
      %v227 = vld [vmem:[%s217 + $0x8] sm:$0x30]
      %s228 = scalar_lea.vmem %s116, 128
      %229 = vst [vmem:[%s228] sm:$0x30] %v226
      %230 = vst [vmem:[%s228 + $0x8] sm:$0x30] %v227
      %s231 = scalar_lea.vmem %s111, 144
      %v232 = vld [vmem:[%s231] sm:$0x3]
      %v233 = vld [vmem:[%s231 + $0x8] sm:$0x3]
      %234 = vst [vmem:[%s228] sm:$0x3] %v232
      %235 = vst [vmem:[%s228 + $0x8] sm:$0x3] %v233
      %v236 = vld [vmem:[%s203] sm:$0xc]
      %v237 = vld [vmem:[%s203 + $0x8] sm:$0xc]
      %238 = vst [vmem:[%s228] sm:$0xc] %v236
      %239 = vst [vmem:[%s228 + $0x8] sm:$0xc] %v237
      %v240 = vld [vmem:[%s231] sm:$0x30]
      %v241 = vld [vmem:[%s231 + $0x8] sm:$0x30]
      %s242 = scalar_lea.vmem %s116, 144
      %243 = vst [vmem:[%s242] sm:$0x30] %v240
      %244 = vst [vmem:[%s242 + $0x8] sm:$0x30] %v241
      %245 = vst [vmem:[%s242] sm:$0x3] 0.0
      %246 = vst [vmem:[%s242 + $0x8] sm:$0x3] 0.0
      %v247 = vld [vmem:[%s217] sm:$0xc]
      %v248 = vld [vmem:[%s217 + $0x8] sm:$0xc]
      %249 = vst [vmem:[%s242] sm:$0xc] %v247
      %250 = vst [vmem:[%s242 + $0x8] sm:$0xc] %v248
      %p251 = scmp.lt.s32.totalorder %s12, 1
      %s252 = scalar_select %p251, %s12, 1
      %s253 = smul.addr %s252, 20
      %s254 = smul.addr %s253, 8
      %s255 = scalar_lea.vmem %s1, %s254
      // Predicated region
      $region25: #{tpu_custom_call.1} parent=23 // pred_check
        %p256 = pneg %p56
      $region26: #{tpu_custom_call.1} parent=23 // pred_check_branch
        %258 = sbr.rel (%p256) target = $region28
      $region27: #{tpu_custom_call.1} parent=23 // pred_region
        _
      $region28: #{tpu_custom_call.1} parent=23 // pred_fallthru
        _
    $region24: #{tpu_custom_call.1} parent=5 // pred_fallthru
      _
    %p259 = scmp.le.s32.totalorder 2, %s7
    // Predicated region
    $region29: #{tpu_custom_call.1} parent=5 // pred_check
      %p260 = pneg %p259
    $region30: #{tpu_custom_call.1} parent=5 // pred_check_branch
      %262 = sbr.rel (%p260) target = $region32
    $region31: #{tpu_custom_call.1} parent=5 // pred_region
      %s263 = ssub.s32 %s7, 2
      // Predicated region
      $region33: #{tpu_custom_call.1} parent=31 // pred_check
        %p264 = pneg %p62
      $region34: #{tpu_custom_call.1} parent=31 // pred_check_branch
        %266 = sbr.rel (%p264) target = $region36
      $region35: #{tpu_custom_call.1} parent=31 // pred_region
        %p267 = scmp.lt.s32.totalorder %s13, 1
        %s268 = scalar_select %p267, %s13, 1
        %s269 = smul.addr %s268, 20
        %s270 = smul.addr %s269, 8
        %s271 = scalar_lea.vmem %s1, %s270
      $region36: #{tpu_custom_call.1} parent=31 // pred_fallthru
        _
    $region32: #{tpu_custom_call.1} parent=5 // pred_fallthru
      _
  $region6: #{tpu_custom_call.1} parent=0 // loop_footer
    %s11 = sadd.s32 1, %s7
  $region7: #{tpu_custom_call.1} parent=0 // loop_footer_branch
    %6 = sbr.rel target = $region3
  $region8: #{tpu_custom_call.1} parent=0 // loop_exit
    _

</llo_original>
